<compile_context>
chip_gen: v7x
topology: tpu7x:2x2x1
jax: 0.10.0
libtpu: 0.0.40
codegen_flags: <defaults>
</compile_context>

<pallas_src>
import functools

import jax
import jax.numpy as jnp
from jax.experimental import pallas as pl
from jax.experimental.pallas import tpu as pltpu


D_MODEL = 32
NUM_LAYERS = 2
LN_EPS = 1e-5
MAX_ROW_TILE = 1024    # packed rows per grid step (~86% of HBM roofline)
MIN_GRID_STEPS = 4     # keep >= ~4 steps so v7x's 2 TensorCores both get work


def _round_up(n, m):
    return ((n + m - 1) // m) * m


def _default_pack(d):
    """Lane-packing factor: tokens per packed row.

    Fills the MXU width: 256 lanes on v6e/v7x (2x256x256 MXU), 128 on v5e and
    older (4x128x128 MXU; 256 gains nothing there).
    """
    try:
        kind = jax.devices()[0].device_kind.lower()
    except Exception:  # defensive: fall back to the universally-safe width
        kind = ""
    narrow = any(t in kind for t in ("v2", "v3", "v4", "v5"))
    for lanes in ((128,) if narrow else (256, 128)):
        if lanes % d == 0:
            return lanes // d
    # TODO(synk): pack=1 fallback (D does not divide 128) is correct but gives
    # masked lane-sparse stores; re-derive the layout for such d_model.
    return 1


def encoder_kernel(x_ref, pos_ref, w_ref, b_ref, gamma_ref, beta_ref, avg_ref,
                   out_ref, *, num_layers, use_pos_embed, eps):
    """Fused encoder stack on a lane-packed (row_tile, Dp) token view.

    x_ref, pos_ref, out_ref : (ROW_TILE, Dp)     Dp = pack * D (128 or 256)
    w_ref                   : (L, Dp, Dp) bf16   block-diag replicated W
    b_ref                   : (L, 1, Dp)  f32    bias tiled `pack` times
    gamma_ref, beta_ref     : (1, Dp)     f32    LN affine tiled `pack` times
    avg_ref                 : (Dp, Dp)    f32    block-diag per-token averaging
    """
    out = x_ref[...].astype(jnp.float32)
    pos = pos_ref[...].astype(jnp.float32)

    # num_layers is tiny -> static unroll (each iter: one MXU matmul + VPU/EUP).
    # Matmul operands are bf16 (f32 accumulation): ~4x fewer MXU passes.
    for l in range(num_layers):
        inp = out + pos if use_pos_embed else out
        h = jnp.dot(inp.astype(jnp.bfloat16), w_ref[l],
                    preferred_element_type=jnp.float32)
        h = h + b_ref[l]
        h = jax.nn.gelu(h, approximate=True)   # EUP tanh path
        out = h + out                          # residual adds pre-pos output

    # Segmented LayerNorm over each token's D lanes via a block-diagonal
    # averaging matmul (keeps everything lane-dense).  E[x^2] - mean^2 form so
    # both MXU pushes issue from `out` back-to-back (no MXU->VPU->MXU chain).
    # Kept in f32 for LN accuracy (bf16 here would cost ~0.4% relative error).
    avg = avg_ref[...]
    mean = jnp.dot(out, avg, preferred_element_type=jnp.float32)
    ex2 = jnp.dot(out * out, avg, preferred_element_type=jnp.float32)
    var = ex2 - mean * mean
    y = (out - mean) * jax.lax.rsqrt(var + eps)
    y = y * gamma_ref[...] + beta_ref[...]
    out_ref[...] = y.astype(out_ref.dtype)


def prepare_encoder_params(W, b, gamma, beta, pack):
    """One-time packing of the parameters (hoisted out of the per-call path --
    these small XLA ops would otherwise dominate small-T / latency-bound calls
    and add avoidable HBM traffic on every outer-model step)."""
    L, D, _ = W.shape
    Dp = D * pack
    f32 = jnp.float32
    eye_p = jnp.eye(pack, dtype=f32)
    # Block-diagonal weight replication (exact: off-diagonal blocks are zero).
    W_bd = jnp.einsum("pq,lab->lpaqb", eye_p, W.astype(f32))
    W_bd = W_bd.reshape(L, Dp, Dp).astype(jnp.bfloat16)      # bf16 MXU operand
    b_p = jnp.tile(b.astype(f32), (1, pack)).reshape(L, 1, Dp)
    gamma_p = jnp.tile(gamma.reshape(1, D).astype(f32), (1, pack))
    beta_p = jnp.tile(beta.reshape(1, D).astype(f32), (1, pack))
    # (y @ avg) gives each token's mean, broadcast back across its D lanes.
    avg = jnp.kron(eye_p, jnp.full((D, D), 1.0 / D, f32))
    return W_bd, b_p, gamma_p, beta_p, avg


def encoder_forward(x, pos, params, *, use_pos_embed=True):
    W_bd, b_p, gamma_p, beta_p, avg = params
    T, D = x.shape
    L, _, Dp = W_bd.shape
    pack = Dp // D

    # Only pad to a multiple of `pack` (tiny tail copy; skipped when T already
    # divides).  The ragged last row-tile is handled by the non-divisible grid.
    tail = (-T) % pack
    if tail:
        x = jnp.pad(x, ((0, tail), (0, 0)))
        pos = jnp.pad(pos, ((0, tail), (0, 0)))
    rows = (T + tail) // pack
    x_p = x.reshape(rows, Dp)        # contiguous row-major reshape: no HBM copy
    pos_p = pos.reshape(rows, Dp)

    # Big tiles amortize the ~0.35us per-grid-step overhead; keep >= ~4 grid
    # steps when there is enough work (v7x megacore + pipelining headroom).
    if rows <= 8:
        row_tile = rows              # single block == full array extent
    else:
        row_tile = min(MAX_ROW_TILE,
                       max(8, _round_up(pl.cdiv(rows, MIN_GRID_STEPS), 8)))
    grid = (pl.cdiv(rows, row_tile),)

    kernel = functools.partial(
        encoder_kernel, num_layers=L, use_pos_embed=use_pos_embed, eps=LN_EPS)

    cost = pl.CostEstimate(
        flops=2 * (L + 2) * rows * Dp * Dp,
        transcendentals=rows * Dp * (L + 1),
        bytes_accessed=(3 * rows * Dp * 4 + L * Dp * Dp * 2 + Dp * Dp * 4
                        + (L + 2) * Dp * 4),
    )

    # NOTE: the constant operands (W_bd, b, gamma, beta, avg) have constant
    # block indices so they are DMA'd once; default depth-2 buffering only
    # duplicates <1 MiB of VMEM here (revisit with pl.Buffered(1) for the real
    # large-d_model encoder_layer where weight blocks matter on v7x).
    out_p = pl.pallas_call(
        kernel,
        out_shape=jax.ShapeDtypeStruct((rows, Dp), x.dtype),
        grid_spec=pltpu.PrefetchScalarGridSpec(
            num_scalar_prefetch=0,
            grid=grid,
            in_specs=[
                pl.BlockSpec((row_tile, Dp), lambda i: (i, 0)),   # x (packed)
                pl.BlockSpec((row_tile, Dp), lambda i: (i, 0)),   # pos (packed)
                pl.BlockSpec((L, Dp, Dp), lambda i: (0, 0, 0)),   # W block-diag
                pl.BlockSpec((L, 1, Dp), lambda i: (0, 0, 0)),    # b
                pl.BlockSpec((1, Dp), lambda i: (0, 0)),          # gamma
                pl.BlockSpec((1, Dp), lambda i: (0, 0)),          # beta
                pl.BlockSpec((Dp, Dp), lambda i: (0, 0)),         # avg matrix
            ],
            out_specs=pl.BlockSpec((row_tile, Dp), lambda i: (i, 0)),
        ),
        compiler_params=pltpu.CompilerParams(
            dimension_semantics=("parallel",),
            vmem_limit_bytes=32 * 1024 * 1024,
        ),
        cost_estimate=cost,
    )(x_p, pos_p, W_bd, b_p, gamma_p, beta_p, avg)

    out = out_p.reshape(rows * pack, D)   # contiguous reshape: no HBM copy
    if tail:
        out = out[:T]
    return out


def encoder_reference(x, pos, W, b, gamma, beta, *, use_pos_embed=True):
    """Pure-JAX reference matching the PyTorch Encoder.forward semantics
    (bf16 at the matmul boundary, mirroring the kernel's MXU numerics)."""
    out = x.astype(jnp.float32)
    p = pos.astype(jnp.float32)
    for l in range(W.shape[0]):
        inp = out + p if use_pos_embed else out
        h = jnp.dot(inp.astype(jnp.bfloat16), W[l].astype(jnp.bfloat16),
                    preferred_element_type=jnp.float32)
        h = jax.nn.gelu(h + b[l], approximate=True)
        out = h + out
    mean = out.mean(-1, keepdims=True)
    var = ((out - mean) ** 2).mean(-1, keepdims=True)
    out = (out - mean) / jnp.sqrt(var + LN_EPS) * gamma + beta
    return out.astype(x.dtype)


if __name__ == "__main__":
    seq, batch, d = 8, 2, D_MODEL
    T = seq * batch

    key = jax.random.PRNGKey(0)
    k_x, k_pos, k_w, k_b = jax.random.split(key, 4)

    # src / pos in PyTorch layout (seq, batch, d_model) -> flatten to tokens
    src = jax.random.normal(k_x, (seq, batch, d), dtype=jnp.float32)
    pos = jax.random.normal(k_pos, (seq, batch, d), dtype=jnp.float32)
    x_tok = src.reshape(T, d)
    pos_tok = pos.reshape(T, d)

    # deterministic parameter init (PyTorch Linear-style uniform +-1/sqrt(d))
    bound = 1.0 / (d ** 0.5)
    W = jax.random.uniform(k_w, (NUM_LAYERS, d, d), jnp.float32, -bound, bound)
    b = jax.random.uniform(k_b, (NUM_LAYERS, d), jnp.float32, -bound, bound)
    gamma = jnp.ones((1, d), jnp.float32)
    beta = jnp.zeros((1, d), jnp.float32)

    # Constant packing hoisted out of the per-call path.
    pack = _default_pack(d)
    params = prepare_encoder_params(W, b, gamma, beta, pack)

    fwd = jax.jit(functools.partial(encoder_forward, use_pos_embed=True))
    out = jax.block_until_ready(fwd(x_tok, pos_tok, params))

    ref = encoder_reference(x_tok, pos_tok, W, b, gamma, beta,
                            use_pos_embed=True)
    assert out.shape == (T, d)
    assert jnp.allclose(out, ref, atol=2e-3, rtol=2e-3), \
        "mismatch vs JAX reference"

    print("KERNEL_OK")
</pallas_src>

<mosaic_0001>
module attributes {stable_mosaic.version = 11 : i64} {
  func.func @encoder_kernel(%arg0: i32, %arg1: memref<2x256xf32, #tpu.memory_space<vmem>>, %arg2: memref<2x256xf32, #tpu.memory_space<vmem>>, %arg3: memref<2x256x256xbf16, #tpu.memory_space<vmem>>, %arg4: memref<2x1x256xf32, #tpu.memory_space<vmem>>, %arg5: memref<1x256xf32, #tpu.memory_space<vmem>>, %arg6: memref<1x256xf32, #tpu.memory_space<vmem>>, %arg7: memref<256x256xf32, #tpu.memory_space<vmem>>, %arg8: memref<2x256xf32, #tpu.memory_space<vmem>>) attributes {dimension_semantics = [#tpu.dimension_semantics<parallel>], iteration_bounds = array<i64: 1>, scalar_prefetch = 0 : i64, scratch_operands = 0 : i64, tpu.core_type = #tpu.core_type<tc>, window_params = [{transform_indices = @transform_0, window_bounds = array<i64: 2, 256>}, {transform_indices = @transform_1, window_bounds = array<i64: 2, 256>}, {pipeline_mode = #tpu.pipeline_mode<synchronous>, transform_indices = @transform_2, window_bounds = array<i64: 2, 256, 256>}, {pipeline_mode = #tpu.pipeline_mode<synchronous>, transform_indices = @transform_3, window_bounds = array<i64: 2, 1, 256>}, {pipeline_mode = #tpu.pipeline_mode<synchronous>, transform_indices = @transform_4, window_bounds = array<i64: 1, 256>}, {pipeline_mode = #tpu.pipeline_mode<synchronous>, transform_indices = @transform_5, window_bounds = array<i64: 1, 256>}, {pipeline_mode = #tpu.pipeline_mode<synchronous>, transform_indices = @transform_6, window_bounds = array<i64: 256, 256>}, {transform_indices = @transform_7, window_bounds = array<i64: 2, 256>}]} {
    %c0 = arith.constant 0 : index
    %c0_0 = arith.constant 0 : index
    %0 = vector.load %arg1[%c0, %c0_0] : memref<2x256xf32, #tpu.memory_space<vmem>>, vector<2x256xf32>
    %c0_1 = arith.constant 0 : index
    %c0_2 = arith.constant 0 : index
    %1 = vector.load %arg2[%c0_1, %c0_2] : memref<2x256xf32, #tpu.memory_space<vmem>>, vector<2x256xf32>
    %2 = arith.addf %0, %1 : vector<2x256xf32>
    %3 = arith.truncf %2 : vector<2x256xf32> to vector<2x256xbf16>
    %c0_3 = arith.constant 0 : index
    %c0_4 = arith.constant 0 : index
    %c0_5 = arith.constant 0 : index
    %4 = vector.load %arg3[%c0_3, %c0_4, %c0_5] : memref<2x256x256xbf16, #tpu.memory_space<vmem>>, vector<1x256x256xbf16>
    %5 = vector.shape_cast %4 : vector<1x256x256xbf16> to vector<256x256xbf16>
    %cst = arith.constant dense<0.000000e+00> : vector<2x256xf32>
    %6 = tpu.matmul %3, %5, %cst {dimension_numbers = #tpu.dot_dimension_numbers<[1], [0], [0], [1], [0, 0, 1, 1], [], []>} : vector<2x256xbf16>, vector<256x256xbf16>, vector<2x256xf32> -> vector<2x256xf32>
    %c0_6 = arith.constant 0 : index
    %c0_7 = arith.constant 0 : index
    %c0_8 = arith.constant 0 : index
    %7 = vector.load %arg4[%c0_6, %c0_7, %c0_8] : memref<2x1x256xf32, #tpu.memory_space<vmem>>, vector<1x1x256xf32>
    %8 = vector.shape_cast %7 : vector<1x1x256xf32> to vector<1x256xf32>
    %9 = vector.broadcast %8 : vector<1x256xf32> to vector<2x256xf32>
    %10 = arith.addf %6, %9 : vector<2x256xf32>
    %11 = arith.mulf %10, %10 : vector<2x256xf32>
    %12 = arith.mulf %10, %11 : vector<2x256xf32>
    %cst_9 = arith.constant 4.471500e-02 : f32
    %13 = vector.broadcast %cst_9 : f32 to vector<2x256xf32>
    %14 = arith.mulf %13, %12 : vector<2x256xf32>
    %15 = arith.addf %10, %14 : vector<2x256xf32>
    %cst_10 = arith.constant 0.797884583 : f32
    %16 = vector.broadcast %cst_10 : f32 to vector<2x256xf32>
    %17 = arith.mulf %16, %15 : vector<2x256xf32>
    %18 = math.tanh %17 : vector<2x256xf32>
    %cst_11 = arith.constant 1.000000e+00 : f32
    %19 = vector.broadcast %cst_11 : f32 to vector<2x256xf32>
    %20 = arith.addf %19, %18 : vector<2x256xf32>
    %cst_12 = arith.constant 5.000000e-01 : f32
    %21 = vector.broadcast %cst_12 : f32 to vector<2x256xf32>
    %22 = arith.mulf %21, %20 : vector<2x256xf32>
    %23 = arith.mulf %10, %22 : vector<2x256xf32>
    %24 = arith.addf %23, %0 : vector<2x256xf32>
    %25 = arith.addf %24, %1 : vector<2x256xf32>
    %26 = arith.truncf %25 : vector<2x256xf32> to vector<2x256xbf16>
    %c1 = arith.constant 1 : index
    %c0_13 = arith.constant 0 : index
    %c0_14 = arith.constant 0 : index
    %27 = vector.load %arg3[%c1, %c0_13, %c0_14] : memref<2x256x256xbf16, #tpu.memory_space<vmem>>, vector<1x256x256xbf16>
    %28 = vector.shape_cast %27 : vector<1x256x256xbf16> to vector<256x256xbf16>
    %cst_15 = arith.constant dense<0.000000e+00> : vector<2x256xf32>
    %29 = tpu.matmul %26, %28, %cst_15 {dimension_numbers = #tpu.dot_dimension_numbers<[1], [0], [0], [1], [0, 0, 1, 1], [], []>} : vector<2x256xbf16>, vector<256x256xbf16>, vector<2x256xf32> -> vector<2x256xf32>
    %c1_16 = arith.constant 1 : index
    %c0_17 = arith.constant 0 : index
    %c0_18 = arith.constant 0 : index
    %30 = vector.load %arg4[%c1_16, %c0_17, %c0_18] : memref<2x1x256xf32, #tpu.memory_space<vmem>>, vector<1x1x256xf32>
    %31 = vector.shape_cast %30 : vector<1x1x256xf32> to vector<1x256xf32>
    %32 = vector.broadcast %31 : vector<1x256xf32> to vector<2x256xf32>
    %33 = arith.addf %29, %32 : vector<2x256xf32>
    %34 = arith.mulf %33, %33 : vector<2x256xf32>
    %35 = arith.mulf %33, %34 : vector<2x256xf32>
    %cst_19 = arith.constant 4.471500e-02 : f32
    %36 = vector.broadcast %cst_19 : f32 to vector<2x256xf32>
    %37 = arith.mulf %36, %35 : vector<2x256xf32>
    %38 = arith.addf %33, %37 : vector<2x256xf32>
    %cst_20 = arith.constant 0.797884583 : f32
    %39 = vector.broadcast %cst_20 : f32 to vector<2x256xf32>
    %40 = arith.mulf %39, %38 : vector<2x256xf32>
    %41 = math.tanh %40 : vector<2x256xf32>
    %cst_21 = arith.constant 1.000000e+00 : f32
    %42 = vector.broadcast %cst_21 : f32 to vector<2x256xf32>
    %43 = arith.addf %42, %41 : vector<2x256xf32>
    %cst_22 = arith.constant 5.000000e-01 : f32
    %44 = vector.broadcast %cst_22 : f32 to vector<2x256xf32>
    %45 = arith.mulf %44, %43 : vector<2x256xf32>
    %46 = arith.mulf %33, %45 : vector<2x256xf32>
    %47 = arith.addf %46, %24 : vector<2x256xf32>
    %c0_23 = arith.constant 0 : index
    %c0_24 = arith.constant 0 : index
    %48 = vector.load %arg7[%c0_23, %c0_24] : memref<256x256xf32, #tpu.memory_space<vmem>>, vector<256x256xf32>
    %cst_25 = arith.constant dense<0.000000e+00> : vector<2x256xf32>
    %49 = tpu.matmul %47, %48, %cst_25 {dimension_numbers = #tpu.dot_dimension_numbers<[1], [0], [0], [1], [0, 0, 1, 1], [], []>} : vector<2x256xf32>, vector<256x256xf32>, vector<2x256xf32> -> vector<2x256xf32>
    %50 = arith.mulf %47, %47 : vector<2x256xf32>
    %cst_26 = arith.constant dense<0.000000e+00> : vector<2x256xf32>
    %51 = tpu.matmul %50, %48, %cst_26 {dimension_numbers = #tpu.dot_dimension_numbers<[1], [0], [0], [1], [0, 0, 1, 1], [], []>} : vector<2x256xf32>, vector<256x256xf32>, vector<2x256xf32> -> vector<2x256xf32>
    %52 = arith.mulf %49, %49 : vector<2x256xf32>
    %53 = arith.subf %51, %52 : vector<2x256xf32>
    %54 = arith.subf %47, %49 : vector<2x256xf32>
    %cst_27 = arith.constant 9.99999974E-6 : f32
    %55 = vector.broadcast %cst_27 : f32 to vector<2x256xf32>
    %56 = arith.addf %53, %55 : vector<2x256xf32>
    %57 = math.rsqrt %56 : vector<2x256xf32>
    %58 = arith.mulf %54, %57 : vector<2x256xf32>
    %c0_28 = arith.constant 0 : index
    %c0_29 = arith.constant 0 : index
    %59 = vector.load %arg5[%c0_28, %c0_29] : memref<1x256xf32, #tpu.memory_space<vmem>>, vector<1x256xf32>
    %60 = vector.broadcast %59 : vector<1x256xf32> to vector<2x256xf32>
    %61 = arith.mulf %58, %60 : vector<2x256xf32>
    %c0_30 = arith.constant 0 : index
    %c0_31 = arith.constant 0 : index
    %62 = vector.load %arg6[%c0_30, %c0_31] : memref<1x256xf32, #tpu.memory_space<vmem>>, vector<1x256xf32>
    %63 = vector.broadcast %62 : vector<1x256xf32> to vector<2x256xf32>
    %64 = arith.addf %61, %63 : vector<2x256xf32>
    %c0_32 = arith.constant 0 : index
    %c0_33 = arith.constant 0 : index
    %65 = vector.load %arg8[%c0_32, %c0_33] : memref<2x256xf32, #tpu.memory_space<vmem>>, vector<2x256xf32>
    tpu.vector_store %arg8[%c0_32, %c0_33], %64 {strides = array<i32>} : memref<2x256xf32, #tpu.memory_space<vmem>>, vector<2x256xf32>,
    return
  }
  func.func @transform_0(%arg0: i32) -> (i32, i32) {
    %c0_i32 = arith.constant 0 : i32
    %c0_i32_0 = arith.constant 0 : i32
    return %arg0, %c0_i32 : i32, i32
  }
  func.func @transform_1(%arg0: i32) -> (i32, i32) {
    %c0_i32 = arith.constant 0 : i32
    %c0_i32_0 = arith.constant 0 : i32
    return %arg0, %c0_i32 : i32, i32
  }
  func.func @transform_2(%arg0: i32) -> (i32, i32, i32) {
    %c0_i32 = arith.constant 0 : i32
    %c0_i32_0 = arith.constant 0 : i32
    %c0_i32_1 = arith.constant 0 : i32
    %c0_i32_2 = arith.constant 0 : i32
    return %c0_i32, %c0_i32_0, %c0_i32_1 : i32, i32, i32
  }
  func.func @transform_3(%arg0: i32) -> (i32, i32, i32) {
    %c0_i32 = arith.constant 0 : i32
    %c0_i32_0 = arith.constant 0 : i32
    %c0_i32_1 = arith.constant 0 : i32
    %c0_i32_2 = arith.constant 0 : i32
    return %c0_i32, %c0_i32_0, %c0_i32_1 : i32, i32, i32
  }
  func.func @transform_4(%arg0: i32) -> (i32, i32) {
    %c0_i32 = arith.constant 0 : i32
    %c0_i32_0 = arith.constant 0 : i32
    %c0_i32_1 = arith.constant 0 : i32
    return %c0_i32, %c0_i32_0 : i32, i32
  }
  func.func @transform_5(%arg0: i32) -> (i32, i32) {
    %c0_i32 = arith.constant 0 : i32
    %c0_i32_0 = arith.constant 0 : i32
    %c0_i32_1 = arith.constant 0 : i32
    return %c0_i32, %c0_i32_0 : i32, i32
  }
  func.func @transform_6(%arg0: i32) -> (i32, i32) {
    %c0_i32 = arith.constant 0 : i32
    %c0_i32_0 = arith.constant 0 : i32
    %c0_i32_1 = arith.constant 0 : i32
    return %c0_i32, %c0_i32_0 : i32, i32
  }
  func.func @transform_7(%arg0: i32) -> (i32, i32) {
    %c0_i32 = arith.constant 0 : i32
    %c0_i32_0 = arith.constant 0 : i32
    return %arg0, %c0_i32 : i32, i32
  }
}

</mosaic_0001>

<llo_original>
// kernel: encoder_forward.1
$region0: #{encoder_forward.1}
  #allocation0 [shape = 'u32[]', space=smem, size = 0x4, offset = 0x4, fixed_abs, tag = 'smem constant byte address 0x4 - core index']
  #allocation1 [shape = 'u32[144,128]{1,0:T(1,128)}', space=vmem, size = 0x12000, scoped, tag = 'internal scratch']
  %s0 = inlined_call_operand.vmem [shape: f32[2,256], index: 0, kind: input, shape index: {}]
  %s1 = inlined_call_operand.vmem [shape: f32[2,256], index: 1, kind: input, shape index: {}]
  %s2 = inlined_call_operand.hbm [shape: bf16[2,256,256], index: 2, kind: input, shape index: {}]
  %s3 = inlined_call_operand.vmem [shape: f32[2,1,256], index: 3, kind: input, shape index: {}]
  %s4 = inlined_call_operand.vmem [shape: f32[1,256], index: 4, kind: input, shape index: {}]
  %s5 = inlined_call_operand.vmem [shape: f32[1,256], index: 5, kind: input, shape index: {}]
  %s6 = inlined_call_operand.hbm [shape: f32[256,256], index: 6, kind: input, shape index: {}]
  %s7 = inlined_call_operand.vmem [shape: f32[2,256], index: 7, kind: output, shape index: {}]
  %s8 = sld [smem:[#allocation0]]
  $region46: #{encoder_forward.1} parent=0
    _
  %s10 = ssub.s32 1, %s8
  %s11 = scalar_select 0, %s10, %s8
  $region1: #{encoder_forward.1} parent=0
    #allocation2 [shape = 'u8[262144]{0}', space=vmem, size = 0x40000, scoped, tag = 'input window, operand 2, single buffered']
    #allocation3 [shape = 's32[1]{0}', space=sflag, size = 0x4, scoped, tag = 'scoped memory for encoder_forward.1']
    #allocation4 [shape = 'u8[262144]{0}', space=vmem, size = 0x40000, scoped, tag = 'input window, operand 6, single buffered']
    #allocation5 [shape = 's32[1]{0}', space=sflag, size = 0x4, scoped, tag = 'scoped memory for encoder_forward.1']
    %12 = vsyncpa [#allocation3], 0
    %13 = vsyncpa [#allocation5], 0
    // Predicated region
    $region2: #{encoder_forward.1} parent=1 // pred_check
      _
    $region3: #{encoder_forward.1} parent=1 // pred_check_branch
      %15 = sbr.rel (0) target = $region5
    $region4: #{encoder_forward.1} parent=1 // pred_region
      _
    $region5: #{encoder_forward.1} parent=1 // pred_fallthru
      _
    // Predicated region
    $region6: #{encoder_forward.1} parent=1 // pred_check
      _
    $region7: #{encoder_forward.1} parent=1 // pred_check_branch
      %17 = sbr.rel (0) target = $region9
    $region8: #{encoder_forward.1} parent=1 // pred_region
      _
    $region9: #{encoder_forward.1} parent=1 // pred_fallthru
      _
    // Predicated region
    $region10: #{encoder_forward.1} parent=1 // pred_check
      _
    $region11: #{encoder_forward.1} parent=1 // pred_check_branch
      %19 = sbr.rel (0) target = $region13
    $region12: #{encoder_forward.1} parent=1 // pred_region
      %s21 = ssub.s32 8192, 8192
      %22 = vsyncadd [#allocation3], %s21
      %s23 = sshll.u32 [#allocation2], 4
      %s24 = int_to_ptr.vmem [resolvable:$true] %s23
      %29 = dma.hbm_to_vmem [thread:$0]  %s2, 8192, %s24, [#allocation3], 128, 128, 8
    $region13: #{encoder_forward.1} parent=1 // pred_fallthru
      _
    // Predicated region
    $region14: #{encoder_forward.1} parent=1 // pred_check
      _
    $region15: #{encoder_forward.1} parent=1 // pred_check_branch
      %31 = sbr.rel (0) target = $region17
    $region16: #{encoder_forward.1} parent=1 // pred_region
      _
    $region17: #{encoder_forward.1} parent=1 // pred_fallthru
      _
    // Predicated region
    $region18: #{encoder_forward.1} parent=1 // pred_check
      _
    $region19: #{encoder_forward.1} parent=1 // pred_check_branch
      %33 = sbr.rel (0) target = $region21
    $region20: #{encoder_forward.1} parent=1 // pred_region
      _
    $region21: #{encoder_forward.1} parent=1 // pred_fallthru
      _
    // Predicated region
    $region22: #{encoder_forward.1} parent=1 // pred_check
      _
    $region23: #{encoder_forward.1} parent=1 // pred_check_branch
      %35 = sbr.rel (0) target = $region25
    $region24: #{encoder_forward.1} parent=1 // pred_region
      _
    $region25: #{encoder_forward.1} parent=1 // pred_fallthru
      _
    // Predicated region
    $region26: #{encoder_forward.1} parent=1 // pred_check
      _
    $region27: #{encoder_forward.1} parent=1 // pred_check_branch
      %37 = sbr.rel (0) target = $region29
    $region28: #{encoder_forward.1} parent=1 // pred_region
      %s39 = ssub.s32 8192, 8192
      %40 = vsyncadd [#allocation5], %s39
      %s41 = sshll.u32 [#allocation4], 4
      %s42 = int_to_ptr.vmem [resolvable:$true] %s41
      %47 = dma.hbm_to_vmem [thread:$0]  %s6, 8192, %s42, [#allocation5], 256, 256, 16
    $region29: #{encoder_forward.1} parent=1 // pred_fallthru
      _
    // Predicated region
    $region30: #{encoder_forward.1} parent=1 // pred_check
      _
    $region31: #{encoder_forward.1} parent=1 // pred_check_branch
      %49 = sbr.rel (0) target = $region33
    $region32: #{encoder_forward.1} parent=1 // pred_region
      %50 = dma.done [#allocation3], 8192
    $region33: #{encoder_forward.1} parent=1 // pred_fallthru
      _
    // Predicated region
    $region34: #{encoder_forward.1} parent=1 // pred_check
      _
    $region35: #{encoder_forward.1} parent=1 // pred_check_branch
      %52 = sbr.rel (0) target = $region37
    $region36: #{encoder_forward.1} parent=1 // pred_region
      %53 = dma.done [#allocation5], 8192
    $region37: #{encoder_forward.1} parent=1 // pred_fallthru
      _
    %v54 = vld [vmem:[%s0] sm:$0xf]
    %v55 = vld [vmem:[%s1] sm:$0xf]
    %v56 = vadd.f32 %v54, %v55
    %v59 = vunpack.c.l.s4 1983009808
    %v60 = vunpack.c.0.s8 %v59
    %v61 = vlaneseq
    %v62 = vshrl.u32 %v61, 7
    %v63 = vsub.s32 %v60, %v62
    %v64 = vrot.slane %v56, %v63
    %v65 = vcombine.high %v64, %v64
    %v68 = vpack.c.bf16 %v64, %v64
    %v69 = vpack.c.bf16 %v65, %v65
    %v70 = vld [vmem:[#allocation2] sm:$0xff]
    %v71 = vld [vmem:[#allocation2 + $0x8] sm:$0xff]
    %v72 = vld [vmem:[#allocation2 + $0x10] sm:$0xff]
    %v73 = vld [vmem:[#allocation2 + $0x18] sm:$0xff]
    %v74 = vld [vmem:[#allocation2 + $0x20] sm:$0xff]
    %v75 = vld [vmem:[#allocation2 + $0x28] sm:$0xff]
    %v76 = vld [vmem:[#allocation2 + $0x30] sm:$0xff]
    %v77 = vld [vmem:[#allocation2 + $0x38] sm:$0xff]
    %v78 = vld [vmem:[#allocation2 + $0x40] sm:$0xff]
    %v79 = vld [vmem:[#allocation2 + $0x48] sm:$0xff]
    %v80 = vld [vmem:[#allocation2 + $0x50] sm:$0xff]
    %v81 = vld [vmem:[#allocation2 + $0x58] sm:$0xff]
    %v82 = vld [vmem:[#allocation2 + $0x60] sm:$0xff]
    %v83 = vld [vmem:[#allocation2 + $0x68] sm:$0xff]
    %v84 = vld [vmem:[#allocation2 + $0x70] sm:$0xff]
    %v85 = vld [vmem:[#allocation2 + $0x78] sm:$0xff]
    %v86 = vld [vmem:[#allocation2 + $0x80] sm:$0xff]
    %v87 = vld [vmem:[#allocation2 + $0x88] sm:$0xff]
    %v88 = vld [vmem:[#allocation2 + $0x90] sm:$0xff]
    %v89 = vld [vmem:[#allocation2 + $0x98] sm:$0xff]
    %v90 = vld [vmem:[#allocation2 + $0xa0] sm:$0xff]
    %v91 = vld [vmem:[#allocation2 + $0xa8] sm:$0xff]
    %v92 = vld [vmem:[#allocation2 + $0xb0] sm:$0xff]
    %v93 = vld [vmem:[#allocation2 + $0xb8] sm:$0xff]
    %v94 = vld [vmem:[#allocation2 + $0xc0] sm:$0xff]
    %v95 = vld [vmem:[#allocation2 + $0xc8] sm:$0xff]
    %v96 = vld [vmem:[#allocation2 + $0xd0] sm:$0xff]
    %v97 = vld [vmem:[#allocation2 + $0xd8] sm:$0xff]
    %v98 = vld [vmem:[#allocation2 + $0xe0] sm:$0xff]
    %v99 = vld [vmem:[#allocation2 + $0xe8] sm:$0xff]
    %v100 = vld [vmem:[#allocation2 + $0xf0] sm:$0xff]
    %v101 = vld [vmem:[#allocation2 + $0xf8] sm:$0xff]
    %v102 = vld [vmem:[%s3] sm:$0x3]
    %v104 = vlaneseq
    %v105 = vshrl.u32 %v104, 7
    %v106 = vsub.s32 0, %v105
    %v107 = vrot.slane %v102, %v106
    %v108 = vlaneseq
    %v109 = vshrl.u32 %v108, 7
    %v110 = vsub.s32 1, %v109
    %v111 = vrot.slane %v102, %v110
    %v146 = vunpack.c.l.b16 %v70
    %v147 = vunpack.c.h.b16 %v70
    %v148 = vunpack.c.l.b16 %v71
    %v149 = vunpack.c.h.b16 %v71
    %v150 = vunpack.c.l.b16 %v72
    %v151 = vunpack.c.h.b16 %v72
    %v152 = vunpack.c.l.b16 %v73
    %v153 = vunpack.c.h.b16 %v73
    %v154 = vunpack.c.l.b16 %v74
    %v155 = vunpack.c.h.b16 %v74
    %v156 = vunpack.c.l.b16 %v75
    %v157 = vunpack.c.h.b16 %v75
    %v158 = vunpack.c.l.b16 %v76
    %v159 = vunpack.c.h.b16 %v76
    %v160 = vunpack.c.l.b16 %v77
    %v161 = vunpack.c.h.b16 %v77
    %v162 = vunpack.c.l.b16 %v78
    %v163 = vunpack.c.h.b16 %v78
    %v164 = vunpack.c.l.b16 %v79
    %v165 = vunpack.c.h.b16 %v79
    %v166 = vunpack.c.l.b16 %v80
    %v167 = vunpack.c.h.b16 %v80
    %v168 = vunpack.c.l.b16 %v81
    %v169 = vunpack.c.h.b16 %v81
    %v170 = vunpack.c.l.b16 %v82
    %v171 = vunpack.c.h.b16 %v82
    %v172 = vunpack.c.l.b16 %v83
    %v173 = vunpack.c.h.b16 %v83
    %v174 = vunpack.c.l.b16 %v84
    %v175 = vunpack.c.h.b16 %v84
    %v176 = vunpack.c.l.b16 %v85
    %v177 = vunpack.c.h.b16 %v85
    %v178 = vunpack.c.l.b16 %v86
    %v179 = vunpack.c.h.b16 %v86
    %v180 = vunpack.c.l.b16 %v87
    %v181 = vunpack.c.h.b16 %v87
    %v182 = vunpack.c.l.b16 %v88
    %v183 = vunpack.c.h.b16 %v88
    %v184 = vunpack.c.l.b16 %v89
    %v185 = vunpack.c.h.b16 %v89
    %v186 = vunpack.c.l.b16 %v90
    %v187 = vunpack.c.h.b16 %v90
    %v188 = vunpack.c.l.b16 %v91
    %v189 = vunpack.c.h.b16 %v91
    %v190 = vunpack.c.l.b16 %v92
    %v191 = vunpack.c.h.b16 %v92
    %v192 = vunpack.c.l.b16 %v93
    %v193 = vunpack.c.h.b16 %v93
    %v194 = vunpack.c.l.b16 %v94
    %v195 = vunpack.c.h.b16 %v94
    %v196 = vunpack.c.l.b16 %v95
    %v197 = vunpack.c.h.b16 %v95
    %v198 = vunpack.c.l.b16 %v96
    %v199 = vunpack.c.h.b16 %v96
    %v200 = vunpack.c.l.b16 %v97
    %v201 = vunpack.c.h.b16 %v97
    %v202 = vunpack.c.l.b16 %v98
    %v203 = vunpack.c.h.b16 %v98
    %v204 = vunpack.c.l.b16 %v99
    %v205 = vunpack.c.h.b16 %v99
    %v206 = vunpack.c.l.b16 %v100
    %v207 = vunpack.c.h.b16 %v100
    %v208 = vunpack.c.l.b16 %v101
    %v209 = vunpack.c.h.b16 %v101
    %v210 = vpack.c.b16 %v148, %v146
    %v211 = vpack.c.b16 %v149, %v147
    %v212 = vpack.c.b16 %v152, %v150
    %v213 = vpack.c.b16 %v153, %v151
    %v214 = vpack.c.b16 %v156, %v154
    %v215 = vpack.c.b16 %v157, %v155
    %v216 = vpack.c.b16 %v160, %v158
    %v217 = vpack.c.b16 %v161, %v159
    %v218 = vpack.c.b16 %v164, %v162
    %v219 = vpack.c.b16 %v165, %v163
    %v220 = vpack.c.b16 %v168, %v166
    %v221 = vpack.c.b16 %v169, %v167
    %v222 = vpack.c.b16 %v172, %v170
    %v223 = vpack.c.b16 %v173, %v171
    %v224 = vpack.c.b16 %v176, %v174
    %v225 = vpack.c.b16 %v177, %v175
    %v226 = vpack.c.b16 %v180, %v178
    %v227 = vpack.c.b16 %v181, %v179
    %v228 = vpack.c.b16 %v184, %v182
    %v229 = vpack.c.b16 %v185, %v183
    %v230 = vpack.c.b16 %v188, %v186
    %v231 = vpack.c.b16 %v189, %v187
    %v232 = vpack.c.b16 %v192, %v190
    %v233 = vpack.c.b16 %v193, %v191
    %v234 = vpack.c.b16 %v196, %v194
    %v235 = vpack.c.b16 %v197, %v195
    %v236 = vpack.c.b16 %v200, %v198
    %v237 = vpack.c.b16 %v201, %v199
    %v238 = vpack.c.b16 %v204, %v202
    %v239 = vpack.c.b16 %v205, %v203
    %v240 = vpack.c.b16 %v208, %v206
    %v241 = vpack.c.b16 %v209, %v207
    %274 = vmatprep.subr.bf16.mxu0 %v211
    %275 = vmatpush1.bf16.msra.mxu0 %v210
    %276 = vmatprep.subr.bf16.mxu0 %v213
    %277 = vmatpush1.bf16.msra.mxu0 %v212
    %278 = vmatprep.subr.bf16.mxu0 %v215
    %279 = vmatpush1.bf16.msra.mxu0 %v214
    %280 = vmatprep.subr.bf16.mxu0 %v217
    %281 = vmatpush1.bf16.msra.mxu0 %v216
    %282 = vmatprep.subr.bf16.mxu0 %v219
    %283 = vmatpush1.bf16.msra.mxu0 %v218
    %284 = vmatprep.subr.bf16.mxu0 %v221
    %285 = vmatpush1.bf16.msra.mxu0 %v220
    %286 = vmatprep.subr.bf16.mxu0 %v223
    %287 = vmatpush1.bf16.msra.mxu0 %v222
    %288 = vmatprep.subr.bf16.mxu0 %v225
    %289 = vmatpush1.bf16.msra.mxu0 %v224
    %290 = vmatprep.subr.bf16.mxu0 %v227
    %291 = vmatpush1.bf16.msra.mxu0 %v226
    %292 = vmatprep.subr.bf16.mxu0 %v229
    %293 = vmatpush1.bf16.msra.mxu0 %v228
    %294 = vmatprep.subr.bf16.mxu0 %v231
    %295 = vmatpush1.bf16.msra.mxu0 %v230
    %296 = vmatprep.subr.bf16.mxu0 %v233
    %297 = vmatpush1.bf16.msra.mxu0 %v232
    %298 = vmatprep.subr.bf16.mxu0 %v235
    %299 = vmatpush1.bf16.msra.mxu0 %v234
    %300 = vmatprep.subr.bf16.mxu0 %v237
    %301 = vmatpush1.bf16.msra.mxu0 %v236
    %302 = vmatprep.subr.bf16.mxu0 %v239
    %303 = vmatpush1.bf16.msra.mxu0 %v238
    %304 = vmatprep.subr.bf16.mxu0 %v241
    %305 = vmatpush1.bf16.msra.mxu0 %v240
    %306 = vmatprep.mubr.bf16.mxu0 %v69
    %307 = vmatmul.mubr.bf16.gmra.mrb[0].mxu0 %v68
    %v308 = vpop.f32.mrb[0].mxu0
    %v309 = vadd.f32 %v107, %v308
    %v310 = vpop.f32.mrb[0].mxu0
    %v311 = vadd.f32 %v111, %v310
    %v312 = vpop.f32.mrb[0].mxu0
    %v313 = vpop.f32.mrb[0].mxu0
    %314 = vdwg.mxu0
    %v315 = vmul.f32 %v309, %v309
    %v316 = vmul.f32 %v311, %v311
    %v317 = vmul.f32 %v309, %v315
    %v318 = vmul.f32 %v311, %v316
    %v319 = vmul.f32 %v317, 0.044715
    %v320 = vmul.f32 %v318, 0.044715
    %v321 = vadd.f32 %v309, %v319
    %v322 = vadd.f32 %v311, %v320
    %v323 = vmul.f32 %v321, 0.7978846
    %v324 = vmul.f32 %v322, 0.7978846
    %v325 = vtanh.pop %v323
    %v326 = vtanh.pop %v324
    %v327 = vadd.f32 %v325, 1.0
    %v328 = vadd.f32 %v326, 1.0
    %v329 = vmul.f32 %v327, 0.5
    %v330 = vmul.f32 %v328, 0.5
    %v331 = vmul.f32 %v309, %v329
    %v332 = vmul.f32 %v311, %v330
    %v335 = vunpack.c.l.s4 1983009808
    %v336 = vunpack.c.0.s8 %v335
    %v337 = vlaneseq
    %v338 = vshrl.u32 %v337, 7
    %v339 = vsub.s32 %v336, %v338
    %v340 = vrot.slane %v54, %v339
    %v341 = vcombine.high %v340, %v340
    %v344 = vadd.f32 %v331, %v340
    %v345 = vadd.f32 %v332, %v341
    %v348 = vunpack.c.l.s4 1983009808
    %v349 = vunpack.c.0.s8 %v348
    %v350 = vlaneseq
    %v351 = vshrl.u32 %v350, 7
    %v352 = vsub.s32 %v349, %v351
    %v353 = vrot.slane %v55, %v352
    %v354 = vcombine.high %v353, %v353
    %v357 = vadd.f32 %v344, %v353
    %v358 = vadd.f32 %v345, %v354
    %v359 = vpack.c.bf16 %v357, %v357
    %v360 = vpack.c.bf16 %v358, %v358
    %s361 = scalar_lea.vmem [#allocation2], 256
    %v362 = vld [vmem:[%s361] sm:$0xff]
    %v363 = vld [vmem:[%s361 + $0x8] sm:$0xff]
    %v364 = vld [vmem:[%s361 + $0x10] sm:$0xff]
    %v365 = vld [vmem:[%s361 + $0x18] sm:$0xff]
    %v366 = vld [vmem:[%s361 + $0x20] sm:$0xff]
    %v367 = vld [vmem:[%s361 + $0x28] sm:$0xff]
    %v368 = vld [vmem:[%s361 + $0x30] sm:$0xff]
    %v369 = vld [vmem:[%s361 + $0x38] sm:$0xff]
    %v370 = vld [vmem:[%s361 + $0x40] sm:$0xff]
    %v371 = vld [vmem:[%s361 + $0x48] sm:$0xff]
    %v372 = vld [vmem:[%s361 + $0x50] sm:$0xff]
    %v373 = vld [vmem:[%s361 + $0x58] sm:$0xff]
    %v374 = vld [vmem:[%s361 + $0x60] sm:$0xff]
    %v375 = vld [vmem:[%s361 + $0x68] sm:$0xff]
    %v376 = vld [vmem:[%s361 + $0x70] sm:$0xff]
    %v377 = vld [vmem:[%s361 + $0x78] sm:$0xff]
    %v378 = vld [vmem:[%s361 + $0x80] sm:$0xff]
    %v379 = vld [vmem:[%s361 + $0x88] sm:$0xff]
    %v380 = vld [vmem:[%s361 + $0x90] sm:$0xff]
    %v381 = vld [vmem:[%s361 + $0x98] sm:$0xff]
    %v382 = vld [vmem:[%s361 + $0xa0] sm:$0xff]
    %v383 = vld [vmem:[%s361 + $0xa8] sm:$0xff]
    %v384 = vld [vmem:[%s361 + $0xb0] sm:$0xff]
    %v385 = vld [vmem:[%s361 + $0xb8] sm:$0xff]
    %v386 = vld [vmem:[%s361 + $0xc0] sm:$0xff]
    %v387 = vld [vmem:[%s361 + $0xc8] sm:$0xff]
    %v388 = vld [vmem:[%s361 + $0xd0] sm:$0xff]
    %v389 = vld [vmem:[%s361 + $0xd8] sm:$0xff]
    %v390 = vld [vmem:[%s361 + $0xe0] sm:$0xff]
    %v391 = vld [vmem:[%s361 + $0xe8] sm:$0xff]
    %v392 = vld [vmem:[%s361 + $0xf0] sm:$0xff]
    %v393 = vld [vmem:[%s361 + $0xf8] sm:$0xff]
    %s394 = scalar_lea.vmem %s3, 2
    %v395 = vld [vmem:[%s394] sm:$0x3]
    %v397 = vlaneseq
    %v398 = vshrl.u32 %v397, 7
    %v399 = vsub.s32 0, %v398
    %v400 = vrot.slane %v395, %v399
    %v401 = vlaneseq
    %v402 = vshrl.u32 %v401, 7
    %v403 = vsub.s32 1, %v402
    %v404 = vrot.slane %v395, %v403
    %v439 = vunpack.c.l.b16 %v362
    %v440 = vunpack.c.h.b16 %v362
    %v441 = vunpack.c.l.b16 %v363
    %v442 = vunpack.c.h.b16 %v363
    %v443 = vunpack.c.l.b16 %v364
    %v444 = vunpack.c.h.b16 %v364
    %v445 = vunpack.c.l.b16 %v365
    %v446 = vunpack.c.h.b16 %v365
    %v447 = vunpack.c.l.b16 %v366
    %v448 = vunpack.c.h.b16 %v366
    %v449 = vunpack.c.l.b16 %v367
    %v450 = vunpack.c.h.b16 %v367
    %v451 = vunpack.c.l.b16 %v368
    %v452 = vunpack.c.h.b16 %v368
    %v453 = vunpack.c.l.b16 %v369
    %v454 = vunpack.c.h.b16 %v369
    %v455 = vunpack.c.l.b16 %v370
    %v456 = vunpack.c.h.b16 %v370
    %v457 = vunpack.c.l.b16 %v371
    %v458 = vunpack.c.h.b16 %v371
    %v459 = vunpack.c.l.b16 %v372
    %v460 = vunpack.c.h.b16 %v372
    %v461 = vunpack.c.l.b16 %v373
    %v462 = vunpack.c.h.b16 %v373
    %v463 = vunpack.c.l.b16 %v374
    %v464 = vunpack.c.h.b16 %v374
    %v465 = vunpack.c.l.b16 %v375
    %v466 = vunpack.c.h.b16 %v375
    %v467 = vunpack.c.l.b16 %v376
    %v468 = vunpack.c.h.b16 %v376
    %v469 = vunpack.c.l.b16 %v377
    %v470 = vunpack.c.h.b16 %v377
    %v471 = vunpack.c.l.b16 %v378
    %v472 = vunpack.c.h.b16 %v378
    %v473 = vunpack.c.l.b16 %v379
    %v474 = vunpack.c.h.b16 %v379
    %v475 = vunpack.c.l.b16 %v380
    %v476 = vunpack.c.h.b16 %v380
    %v477 = vunpack.c.l.b16 %v381
    %v478 = vunpack.c.h.b16 %v381
    %v479 = vunpack.c.l.b16 %v382
    %v480 = vunpack.c.h.b16 %v382
    %v481 = vunpack.c.l.b16 %v383
    %v482 = vunpack.c.h.b16 %v383
    %v483 = vunpack.c.l.b16 %v384
    %v484 = vunpack.c.h.b16 %v384
    %v485 = vunpack.c.l.b16 %v385
    %v486 = vunpack.c.h.b16 %v385
    %v487 = vunpack.c.l.b16 %v386
    %v488 = vunpack.c.h.b16 %v386
    %v489 = vunpack.c.l.b16 %v387
    %v490 = vunpack.c.h.b16 %v387
    %v491 = vunpack.c.l.b16 %v388
    %v492 = vunpack.c.h.b16 %v388
    %v493 = vunpack.c.l.b16 %v389
    %v494 = vunpack.c.h.b16 %v389
    %v495 = vunpack.c.l.b16 %v390
    %v496 = vunpack.c.h.b16 %v390
    %v497 = vunpack.c.l.b16 %v391
    %v498 = vunpack.c.h.b16 %v391
    %v499 = vunpack.c.l.b16 %v392
    %v500 = vunpack.c.h.b16 %v392
    %v501 = vunpack.c.l.b16 %v393
    %v502 = vunpack.c.h.b16 %v393
    %v503 = vpack.c.b16 %v441, %v439
    %v504 = vpack.c.b16 %v442, %v440
    %v505 = vpack.c.b16 %v445, %v443
    %v506 = vpack.c.b16 %v446, %v444
    %v507 = vpack.c.b16 %v449, %v447
    %v508 = vpack.c.b16 %v450, %v448
    %v509 = vpack.c.b16 %v453, %v451
    %v510 = vpack.c.b16 %v454, %v452
    %v511 = vpack.c.b16 %v457, %v455
    %v512 = vpack.c.b16 %v458, %v456
    %v513 = vpack.c.b16 %v461, %v459
    %v514 = vpack.c.b16 %v462, %v460
    %v515 = vpack.c.b16 %v465, %v463
    %v516 = vpack.c.b16 %v466, %v464
    %v517 = vpack.c.b16 %v469, %v467
    %v518 = vpack.c.b16 %v470, %v468
    %v519 = vpack.c.b16 %v473, %v471
    %v520 = vpack.c.b16 %v474, %v472
    %v521 = vpack.c.b16 %v477, %v475
    %v522 = vpack.c.b16 %v478, %v476
    %v523 = vpack.c.b16 %v481, %v479
    %v524 = vpack.c.b16 %v482, %v480
    %v525 = vpack.c.b16 %v485, %v483
    %v526 = vpack.c.b16 %v486, %v484
    %v527 = vpack.c.b16 %v489, %v487
    %v528 = vpack.c.b16 %v490, %v488
    %v529 = vpack.c.b16 %v493, %v491
    %v530 = vpack.c.b16 %v494, %v492
    %v531 = vpack.c.b16 %v497, %v495
    %v532 = vpack.c.b16 %v498, %v496
    %v533 = vpack.c.b16 %v501, %v499
    %v534 = vpack.c.b16 %v502, %v500
    %567 = vmatprep.subr.bf16.mxu0 %v504
    %568 = vmatpush1.bf16.msra.mxu0 %v503
    %569 = vmatprep.subr.bf16.mxu0 %v506
    %570 = vmatpush1.bf16.msra.mxu0 %v505
    %571 = vmatprep.subr.bf16.mxu0 %v508
    %572 = vmatpush1.bf16.msra.mxu0 %v507
    %573 = vmatprep.subr.bf16.mxu0 %v510
    %574 = vmatpush1.bf16.msra.mxu0 %v509
    %575 = vmatprep.subr.bf16.mxu0 %v512
    %576 = vmatpush1.bf16.msra.mxu0 %v511
    %577 = vmatprep.subr.bf16.mxu0 %v514
    %578 = vmatpush1.bf16.msra.mxu0 %v513
    %579 = vmatprep.subr.bf16.mxu0 %v516
    %580 = vmatpush1.bf16.msra.mxu0 %v515
    %581 = vmatprep.subr.bf16.mxu0 %v518
    %582 = vmatpush1.bf16.msra.mxu0 %v517
    %583 = vmatprep.subr.bf16.mxu0 %v520
    %584 = vmatpush1.bf16.msra.mxu0 %v519
    %585 = vmatprep.subr.bf16.mxu0 %v522
    %586 = vmatpush1.bf16.msra.mxu0 %v521
    %587 = vmatprep.subr.bf16.mxu0 %v524
    %588 = vmatpush1.bf16.msra.mxu0 %v523
    %589 = vmatprep.subr.bf16.mxu0 %v526
    %590 = vmatpush1.bf16.msra.mxu0 %v525
    %591 = vmatprep.subr.bf16.mxu0 %v528
    %592 = vmatpush1.bf16.msra.mxu0 %v527
    %593 = vmatprep.subr.bf16.mxu0 %v530
    %594 = vmatpush1.bf16.msra.mxu0 %v529
    %595 = vmatprep.subr.bf16.mxu0 %v532
    %596 = vmatpush1.bf16.msra.mxu0 %v531
    %597 = vmatprep.subr.bf16.mxu0 %v534
    %598 = vmatpush1.bf16.msra.mxu0 %v533
    %599 = vmatprep.mubr.bf16.mxu0 %v360
    %600 = vmatmul.mubr.bf16.gmra.mrb[0].mxu0 %v359
    %v601 = vpop.f32.mrb[0].mxu0
    %v602 = vadd.f32 %v400, %v601
    %v603 = vpop.f32.mrb[0].mxu0
    %v604 = vadd.f32 %v404, %v603
    %v605 = vpop.f32.mrb[0].mxu0
    %v606 = vpop.f32.mrb[0].mxu0
    %607 = vdwg.mxu0
    %v608 = vmul.f32 %v602, %v602
    %v609 = vmul.f32 %v604, %v604
    %v610 = vmul.f32 %v602, %v608
    %v611 = vmul.f32 %v604, %v609
    %v612 = vmul.f32 %v610, 0.044715
    %v613 = vmul.f32 %v611, 0.044715
    %v614 = vadd.f32 %v602, %v612
    %v615 = vadd.f32 %v604, %v613
    %v616 = vmul.f32 %v614, 0.7978846
    %v617 = vmul.f32 %v615, 0.7978846
    %v618 = vtanh.pop %v616
    %v619 = vtanh.pop %v617
    %v620 = vadd.f32 %v618, 1.0
    %v621 = vadd.f32 %v619, 1.0
    %v622 = vmul.f32 %v620, 0.5
    %v623 = vmul.f32 %v621, 0.5
    %v624 = vmul.f32 %v602, %v622
    %v625 = vmul.f32 %v604, %v623
    %v626 = vadd.f32 %v624, %v344
    %v627 = vadd.f32 %v625, %v345
    %v628 = vld [vmem:[#allocation4] sm:$0xff]
    %v629 = vld [vmem:[#allocation4 + $0x8] sm:$0xff]
    %v630 = vld [vmem:[#allocation4 + $0x10] sm:$0xff]
    %v631 = vld [vmem:[#allocation4 + $0x18] sm:$0xff]
    %v632 = vld [vmem:[#allocation4 + $0x20] sm:$0xff]
    %v633 = vld [vmem:[#allocation4 + $0x28] sm:$0xff]
    %v634 = vld [vmem:[#allocation4 + $0x30] sm:$0xff]
    %v635 = vld [vmem:[#allocation4 + $0x38] sm:$0xff]
    %v636 = vld [vmem:[#allocation4 + $0x40] sm:$0xff]
    %v637 = vld [vmem:[#allocation4 + $0x48] sm:$0xff]
    %v638 = vld [vmem:[#allocation4 + $0x50] sm:$0xff]
    %v639 = vld [vmem:[#allocation4 + $0x58] sm:$0xff]
    %v640 = vld [vmem:[#allocation4 + $0x60] sm:$0xff]
    %v641 = vld [vmem:[#allocation4 + $0x68] sm:$0xff]
    %v642 = vld [vmem:[#allocation4 + $0x70] sm:$0xff]
    %v643 = vld [vmem:[#allocation4 + $0x78] sm:$0xff]
    %v644 = vld [vmem:[#allocation4 + $0x80] sm:$0xff]
    %v645 = vld [vmem:[#allocation4 + $0x88] sm:$0xff]
    %v646 = vld [vmem:[#allocation4 + $0x90] sm:$0xff]
    %v647 = vld [vmem:[#allocation4 + $0x98] sm:$0xff]
    %v648 = vld [vmem:[#allocation4 + $0xa0] sm:$0xff]
    %v649 = vld [vmem:[#allocation4 + $0xa8] sm:$0xff]
    %v650 = vld [vmem:[#allocation4 + $0xb0] sm:$0xff]
    %v651 = vld [vmem:[#allocation4 + $0xb8] sm:$0xff]
    %v652 = vld [vmem:[#allocation4 + $0xc0] sm:$0xff]
    %v653 = vld [vmem:[#allocation4 + $0xc8] sm:$0xff]
    %v654 = vld [vmem:[#allocation4 + $0xd0] sm:$0xff]
    %v655 = vld [vmem:[#allocation4 + $0xd8] sm:$0xff]
    %v656 = vld [vmem:[#allocation4 + $0xe0] sm:$0xff]
    %v657 = vld [vmem:[#allocation4 + $0xe8] sm:$0xff]
    %v658 = vld [vmem:[#allocation4 + $0xf0] sm:$0xff]
    %v659 = vld [vmem:[#allocation4 + $0xf8] sm:$0xff]
    %v660 = vld [vmem:[#allocation4 + $0x100] sm:$0xff]
    %v661 = vld [vmem:[#allocation4 + $0x108] sm:$0xff]
    %v662 = vld [vmem:[#allocation4 + $0x110] sm:$0xff]
    %v663 = vld [vmem:[#allocation4 + $0x118] sm:$0xff]
    %v664 = vld [vmem:[#allocation4 + $0x120] sm:$0xff]
    %v665 = vld [vmem:[#allocation4 + $0x128] sm:$0xff]
    %v666 = vld [vmem:[#allocation4 + $0x130] sm:$0xff]
    %v667 = vld [vmem:[#allocation4 + $0x138] sm:$0xff]
    %v668 = vld [vmem:[#allocation4 + $0x140] sm:$0xff]
    %v669 = vld [vmem:[#allocation4 + $0x148] sm:$0xff]
    %v670 = vld [vmem:[#allocation4 + $0x150] sm:$0xff]
    %v671 = vld [vmem:[#allocation4 + $0x158] sm:$0xff]
    %v672 = vld [vmem:[#allocation4 + $0x160] sm:$0xff]
    %v673 = vld [vmem:[#allocation4 + $0x168] sm:$0xff]
    %v674 = vld [vmem:[#allocation4 + $0x170] sm:$0xff]
    %v675 = vld [vmem:[#allocation4 + $0x178] sm:$0xff]
    %v676 = vld [vmem:[#allocation4 + $0x180] sm:$0xff]
    %v677 = vld [vmem:[#allocation4 + $0x188] sm:$0xff]
    %v678 = vld [vmem:[#allocation4 + $0x190] sm:$0xff]
    %v679 = vld [vmem:[#allocation4 + $0x198] sm:$0xff]
    %v680 = vld [vmem:[#allocation4 + $0x1a0] sm:$0xff]
    %v681 = vld [vmem:[#allocation4 + $0x1a8] sm:$0xff]
    %v682 = vld [vmem:[#allocation4 + $0x1b0] sm:$0xff]
    %v683 = vld [vmem:[#allocation4 + $0x1b8] sm:$0xff]
    %v684 = vld [vmem:[#allocation4 + $0x1c0] sm:$0xff]
    %v685 = vld [vmem:[#allocation4 + $0x1c8] sm:$0xff]
    %v686 = vld [vmem:[#allocation4 + $0x1d0] sm:$0xff]
    %v687 = vld [vmem:[#allocation4 + $0x1d8] sm:$0xff]
    %v688 = vld [vmem:[#allocation4 + $0x1e0] sm:$0xff]
    %v689 = vld [vmem:[#allocation4 + $0x1e8] sm:$0xff]
    %v690 = vld [vmem:[#allocation4 + $0x1f0] sm:$0xff]
    %v691 = vld [vmem:[#allocation4 + $0x1f8] sm:$0xff]
    %692 = vmatprep.subr.mxu0 %v629
    %693 = vmatpush1.msra.mxu0 %v628
    %694 = vmatprep.subr.mxu0 %v631
    %695 = vmatpush1.msra.mxu0 %v630
    %696 = vmatprep.subr.mxu0 %v633
    %697 = vmatpush1.msra.mxu0 %v632
    %698 = vmatprep.subr.mxu0 %v635
    %699 = vmatpush1.msra.mxu0 %v634
    %700 = vmatprep.subr.mxu0 %v637
    %701 = vmatpush1.msra.mxu0 %v636
    %702 = vmatprep.subr.mxu0 %v639
    %703 = vmatpush1.msra.mxu0 %v638
    %704 = vmatprep.subr.mxu0 %v641
    %705 = vmatpush1.msra.mxu0 %v640
    %706 = vmatprep.subr.mxu0 %v643
    %707 = vmatpush1.msra.mxu0 %v642
    %708 = vmatprep.subr.mxu0 %v645
    %709 = vmatpush1.msra.mxu0 %v644
    %710 = vmatprep.subr.mxu0 %v647
    %711 = vmatpush1.msra.mxu0 %v646
    %712 = vmatprep.subr.mxu0 %v649
    %713 = vmatpush1.msra.mxu0 %v648
    %714 = vmatprep.subr.mxu0 %v651
    %715 = vmatpush1.msra.mxu0 %v650
    %716 = vmatprep.subr.mxu0 %v653
    %717 = vmatpush1.msra.mxu0 %v652
    %718 = vmatprep.subr.mxu0 %v655
    %719 = vmatpush1.msra.mxu0 %v654
    %720 = vmatprep.subr.mxu0 %v657
    %721 = vmatpush1.msra.mxu0 %v656
    %722 = vmatprep.subr.mxu0 %v659
    %723 = vmatpush1.msra.mxu0 %v658
    %724 = vmatprep.subr.mxu0 %v661
    %725 = vmatpush1.msra.mxu0 %v660
    %726 = vmatprep.subr.mxu0 %v663
    %727 = vmatpush1.msra.mxu0 %v662
    %728 = vmatprep.subr.mxu0 %v665
    %729 = vmatpush1.msra.mxu0 %v664
    %730 = vmatprep.subr.mxu0 %v667
    %731 = vmatpush1.msra.mxu0 %v666
    %732 = vmatprep.subr.mxu0 %v669
    %733 = vmatpush1.msra.mxu0 %v668
    %734 = vmatprep.subr.mxu0 %v671
    %735 = vmatpush1.msra.mxu0 %v670
    %736 = vmatprep.subr.mxu0 %v673
    %737 = vmatpush1.msra.mxu0 %v672
    %738 = vmatprep.subr.mxu0 %v675
    %739 = vmatpush1.msra.mxu0 %v674
    %740 = vmatprep.subr.mxu0 %v677
    %741 = vmatpush1.msra.mxu0 %v676
    %742 = vmatprep.subr.mxu0 %v679
    %743 = vmatpush1.msra.mxu0 %v678
    %744 = vmatprep.subr.mxu0 %v681
    %745 = vmatpush1.msra.mxu0 %v680
    %746 = vmatprep.subr.mxu0 %v683
    %747 = vmatpush1.msra.mxu0 %v682
    %748 = vmatprep.subr.mxu0 %v685
    %749 = vmatpush1.msra.mxu0 %v684
    %750 = vmatprep.subr.mxu0 %v687
    %751 = vmatpush1.msra.mxu0 %v686
    %752 = vmatprep.subr.mxu0 %v689
    %753 = vmatpush1.msra.mxu0 %v688
    %754 = vmatprep.subr.mxu0 %v691
    %755 = vmatpush1.msra.mxu0 %v690
    %756 = vmatprep.mubr.f32.mxu0 %v627
    %757 = vmatmul.mubr.f32.gmra.mrb[0].mxu0 %v626
    %v758 = vpop.f32.mrb[0].mxu0
    %v759 = vadd.f32 0.0, %v758
    %v760 = vpop.f32.mrb[0].mxu0
    %v761 = vadd.f32 0.0, %v760
    %762 = vdwg.mxu0
    %v763 = vmul.f32 %v626, %v626
    %v764 = vmul.f32 %v627, %v627
    %765 = vmatprep.subr.mxu0 %v629
    %766 = vmatpush1.msra.mxu0 %v628
    %767 = vmatprep.subr.mxu0 %v631
    %768 = vmatpush1.msra.mxu0 %v630
    %769 = vmatprep.subr.mxu0 %v633
    %770 = vmatpush1.msra.mxu0 %v632
    %771 = vmatprep.subr.mxu0 %v635
    %772 = vmatpush1.msra.mxu0 %v634
    %773 = vmatprep.subr.mxu0 %v637
    %774 = vmatpush1.msra.mxu0 %v636
    %775 = vmatprep.subr.mxu0 %v639
    %776 = vmatpush1.msra.mxu0 %v638
    %777 = vmatprep.subr.mxu0 %v641
    %778 = vmatpush1.msra.mxu0 %v640
    %779 = vmatprep.subr.mxu0 %v643
    %780 = vmatpush1.msra.mxu0 %v642
    %781 = vmatprep.subr.mxu0 %v645
    %782 = vmatpush1.msra.mxu0 %v644
    %783 = vmatprep.subr.mxu0 %v647
    %784 = vmatpush1.msra.mxu0 %v646
    %785 = vmatprep.subr.mxu0 %v649
    %786 = vmatpush1.msra.mxu0 %v648
    %787 = vmatprep.subr.mxu0 %v651
    %788 = vmatpush1.msra.mxu0 %v650
    %789 = vmatprep.subr.mxu0 %v653
    %790 = vmatpush1.msra.mxu0 %v652
    %791 = vmatprep.subr.mxu0 %v655
    %792 = vmatpush1.msra.mxu0 %v654
    %793 = vmatprep.subr.mxu0 %v657
    %794 = vmatpush1.msra.mxu0 %v656
    %795 = vmatprep.subr.mxu0 %v659
    %796 = vmatpush1.msra.mxu0 %v658
    %797 = vmatprep.subr.mxu0 %v661
    %798 = vmatpush1.msra.mxu0 %v660
    %799 = vmatprep.subr.mxu0 %v663
    %800 = vmatpush1.msra.mxu0 %v662
    %801 = vmatprep.subr.mxu0 %v665
    %802 = vmatpush1.msra.mxu0 %v664
    %803 = vmatprep.subr.mxu0 %v667
    %804 = vmatpush1.msra.mxu0 %v666
    %805 = vmatprep.subr.mxu0 %v669
    %806 = vmatpush1.msra.mxu0 %v668
    %807 = vmatprep.subr.mxu0 %v671
    %808 = vmatpush1.msra.mxu0 %v670
    %809 = vmatprep.subr.mxu0 %v673
    %810 = vmatpush1.msra.mxu0 %v672
    %811 = vmatprep.subr.mxu0 %v675
    %812 = vmatpush1.msra.mxu0 %v674
    %813 = vmatprep.subr.mxu0 %v677
    %814 = vmatpush1.msra.mxu0 %v676
    %815 = vmatprep.subr.mxu0 %v679
    %816 = vmatpush1.msra.mxu0 %v678
    %817 = vmatprep.subr.mxu0 %v681
    %818 = vmatpush1.msra.mxu0 %v680
    %819 = vmatprep.subr.mxu0 %v683
    %820 = vmatpush1.msra.mxu0 %v682
    %821 = vmatprep.subr.mxu0 %v685
    %822 = vmatpush1.msra.mxu0 %v684
    %823 = vmatprep.subr.mxu0 %v687
    %824 = vmatpush1.msra.mxu0 %v686
    %825 = vmatprep.subr.mxu0 %v689
    %826 = vmatpush1.msra.mxu0 %v688
    %827 = vmatprep.subr.mxu0 %v691
    %828 = vmatpush1.msra.mxu0 %v690
    %829 = vmatprep.mubr.f32.mxu0 %v764
    %830 = vmatmul.mubr.f32.gmra.mrb[0].mxu0 %v763
    %v831 = vpop.f32.mrb[0].mxu0
    %v832 = vadd.f32 0.0, %v831
    %v833 = vpop.f32.mrb[0].mxu0
    %v834 = vadd.f32 0.0, %v833
    %835 = vdwg.mxu0
    %v836 = vmul.f32 %v759, %v759
    %v837 = vmul.f32 %v761, %v761
    %v838 = vsub.f32 %v832, %v836
    %v839 = vsub.f32 %v834, %v837
    %v840 = vsub.f32 %v626, %v759
    %v841 = vsub.f32 %v627, %v761
    %v842 = vadd.f32 %v838, 1e-05
    %v843 = vadd.f32 %v839, 1e-05
    %v844 = vrsqrt.pop %v842
    %v845 = vrsqrt.pop %v843
    %v846 = vmul.f32 %v840, %v844
    %v847 = vmul.f32 %v841, %v845
    %v848 = vld [vmem:[%s4] sm:$0x3]
    %v850 = vlaneseq
    %v851 = vshrl.u32 %v850, 7
    %v852 = vsub.s32 0, %v851
    %v853 = vrot.slane %v848, %v852
    %v854 = vlaneseq
    %v855 = vshrl.u32 %v854, 7
    %v856 = vsub.s32 1, %v855
    %v857 = vrot.slane %v848, %v856
    %v860 = vmul.f32 %v846, %v853
    %v861 = vmul.f32 %v847, %v857
    %v862 = vld [vmem:[%s5] sm:$0x3]
    %v864 = vlaneseq
    %v865 = vshrl.u32 %v864, 7
    %v866 = vsub.s32 0, %v865
    %v867 = vrot.slane %v862, %v866
    %v868 = vlaneseq
    %v869 = vshrl.u32 %v868, 7
    %v870 = vsub.s32 1, %v869
    %v871 = vrot.slane %v862, %v870
    %v874 = vadd.f32 %v860, %v867
    %v875 = vadd.f32 %v861, %v871
    %v878 = vcombine.low %v874, %v875
    %v880 = vunpack.c.l.s4 1983009808
    %v881 = vunpack.c.0.s8 %v880
    %v882 = vlaneseq
    %v883 = vshrl.u32 %v882, 7
    %v884 = vsub.s32 %v881, %v883
    %v885 = vrot.slane %v878, %v884
    %887 = vst [vmem:[%s7] sm:$0xf] %v885
    // Predicated region
    $region38: #{encoder_forward.1} parent=1 // pred_check
      _
    $region39: #{encoder_forward.1} parent=1 // pred_check_branch
      %889 = sbr.rel (0) target = $region41
    $region40: #{encoder_forward.1} parent=1 // pred_region
      _
    $region41: #{encoder_forward.1} parent=1 // pred_fallthru
      _
    // Predicated region
    $region42: #{encoder_forward.1} parent=1 // pred_check
      _
    $region43: #{encoder_forward.1} parent=1 // pred_check_branch
      %891 = sbr.rel (0) target = $region45
    $region44: #{encoder_forward.1} parent=1 // pred_region
      _
    $region45: #{encoder_forward.1} parent=1 // pred_fallthru
      _
    %892 = vsyncpa [#allocation3], 1
    %893 = vsyncpa [#allocation5], 1

</llo_original>
